<compile_context>
chip_gen: v7x
topology: tpu7x:2x2x1
jax: 0.10.0
libtpu: 0.0.40
codegen_flags: <defaults>
</compile_context>

<pallas_src>
import functools
import math

import jax
import jax.numpy as jnp
from jax.experimental import pallas as pl
from jax.experimental.pallas import tpu as pltpu

LANES = 128
SUBLANES = 8
MAX_TILE_ROWS = 4096          # (4096, 128) f32 tile = 2 MiB per input buffer
_LN2 = 0.6931471805599453


def _fpr_loss_kernel(val_fnr_ref, y_pred_ref, y_true_ref, out_ref, *,
                     all_record, c_exp, epsilon, full_rows, rem,
                     tile_rows, steps_per_chunk, nblocks):
    p = pl.program_id(0)               # chunk axis ("parallel" -> dual TC on v7x)
    s = pl.program_id(1)               # step within chunk (reduction axis)
    gb = p * steps_per_chunk + s       # intended global tile index (may point
                                       # past the last real tile -> duplicate)

    @pl.when(s == 0)
    def _():
        out_ref[...] = jnp.zeros_like(out_ref)

    vf = val_fnr_ref[0]                # scalar from SMEM

    def tile_loss(x, yt):
        # Numerically stable sigmoid and log(1 - sigmoid(x)) = -softplus(x),
        # both reusing a single exp(-|x|).
        ea = jnp.exp(-jnp.abs(x))
        inv = pl.reciprocal(1.0 + ea, approx=True)
        yp = jnp.where(x >= 0.0, inv, ea * inv)               # sigmoid(x)
        log1m_yp = -(jnp.maximum(x, 0.0) + jnp.log(1.0 + ea))  # log(1-sigmoid)

        # denominator = y_pred - y_pred*y_true + all_record*val_fnr, clamp(min=eps)
        denom = jnp.maximum(yp - yp * yt + all_record * vf, epsilon)

        # bf_rate = 2 ** (-(memory/denom)*ln2) == exp(-(memory*ln2^2)/denom)
        bf = jnp.exp(-c_exp * pl.reciprocal(denom, approx=True))
        bf = jnp.clip(bf, epsilon, 1.0 - epsilon)

        # bce = -(1-y_true)*log(1-y_pred) - 0.6*y_true*(1-y_pred)*log(1-bf)
        # (negative-sample term is y_true-gated, so it matches the PyTorch
        #  `if y_true.any()` branch for finite inputs.)
        bce = -(1.0 - yt) * log1m_yp
        return bce - 0.6 * yt * (1.0 - yp) * jnp.log(1.0 - bf)

    def reduce_to_vreg(v):             # (tile_rows,128) -> (8,128); VPU-only adds
        return v.reshape(tile_rows // SUBLANES, SUBLANES, LANES).sum(axis=0)

    # Steady state: every element of this tile is a real input element.
    @pl.when(gb < nblocks - 1)
    def _():
        x = y_pred_ref[...].astype(jnp.float32)
        yt = y_true_ref[...].astype(jnp.float32)
        out_ref[...] += reduce_to_vreg(tile_loss(x, yt))

    # Last real tile (possibly partial) and clamped duplicate tiles: mask.
    @pl.when(gb >= nblocks - 1)
    def _():
        shape = (tile_rows, LANES)
        row = jax.lax.broadcasted_iota(jnp.int32, shape, 0) + gb * tile_rows
        lane = jax.lax.broadcasted_iota(jnp.int32, shape, 1)
        valid = (row < full_rows) | ((row == full_rows) & (lane < rem))
        # Neutralize inputs BEFORE the transcendental chain so the unspecified
        # contents of the implicit partial-block padding cannot create NaN/inf.
        x = jnp.where(valid, y_pred_ref[...].astype(jnp.float32), 0.0)
        yt = jnp.where(valid, y_true_ref[...].astype(jnp.float32), 0.0)
        bce = jnp.where(valid, tile_loss(x, yt), 0.0)
        out_ref[...] += reduce_to_vreg(bce)


@functools.partial(jax.jit, static_argnames=("all_record", "memory", "epsilon"))
def _fpr_loss_call(y_pred, y_true, val_fnr, *, all_record, memory, epsilon):
    y_pred, y_true = jnp.broadcast_arrays(y_pred, y_true)

    def _as_stream(a):
        a = jnp.ravel(a)
        if (not jnp.issubdtype(a.dtype, jnp.floating)) or a.dtype == jnp.float64:
            a = a.astype(jnp.float32)
        return a                      # bf16/f16 streamed as-is; kernel upcasts

    yp = _as_stream(y_pred)
    yt = _as_stream(y_true)
    n = yp.shape[0]

    quantum = SUBLANES * LANES        # 1024
    if n % quantum == 0:
        rows = n // LANES             # zero-copy path: reshape is a bitcast
        yp2 = yp.reshape(rows, LANES)
        yt2 = yt.reshape(rows, LANES)
    else:
        # TODO(synk): unaligned n costs one pad copy per stream; callers that
        # can supply 1024-aligned flattened inputs take the zero-copy path.
        rows = (-(-n // quantum)) * SUBLANES
        pad = rows * LANES - n
        yp2 = jnp.pad(yp, (0, pad)).reshape(rows, LANES)
        yt2 = jnp.pad(yt, (0, pad)).reshape(rows, LANES)

    tile_rows = min(rows, MAX_TILE_ROWS)
    assert tile_rows % SUBLANES == 0
    nblocks = -(-rows // tile_rows)
    num_chunks = 2 if nblocks >= 2 else 1        # parallel axis (dual-TC on v7x)
    steps_per_chunk = -(-nblocks // num_chunks)

    val_fnr_arr = jnp.asarray(val_fnr, jnp.float32).reshape(1)

    kernel = functools.partial(
        _fpr_loss_kernel,
        all_record=float(all_record),
        c_exp=float(memory) * _LN2 * _LN2,
        epsilon=float(epsilon),
        full_rows=int(n // LANES),
        rem=int(n % LANES),
        tile_rows=int(tile_rows),
        steps_per_chunk=int(steps_per_chunk),
        nblocks=int(nblocks),
    )

    def tile_map(p, s):
        # Clamp duplicate trailing tiles (when nblocks % num_chunks != 0) onto
        # the last real tile; the in-kernel mask zeroes their contribution.
        return (jnp.minimum(p * steps_per_chunk + s, nblocks - 1), 0)

    partials = pl.pallas_call(
        kernel,
        out_shape=jax.ShapeDtypeStruct((num_chunks * SUBLANES, LANES), jnp.float32),
        grid_spec=pltpu.PrefetchScalarGridSpec(
            num_scalar_prefetch=0,
            grid=(num_chunks, steps_per_chunk),
            in_specs=[
                pl.BlockSpec(memory_space=pltpu.SMEM),            # val_fnr
                pl.BlockSpec((tile_rows, LANES), tile_map),       # y_pred
                pl.BlockSpec((tile_rows, LANES), tile_map),       # y_true
            ],
            out_specs=pl.BlockSpec((SUBLANES, LANES), lambda p, s: (p, 0)),
        ),
        compiler_params=pltpu.CompilerParams(
            dimension_semantics=("parallel", "arbitrary"),
            vmem_limit_bytes=64 * 1024 * 1024),
    )(val_fnr_arr, yp2, yt2)

    return jnp.sum(partials) * (1.0 / n)


class FprLossPallas:
    """Pallas re-implementation of fpr_loss (no learned parameters)."""

    def __init__(self, all_record, all_memory, model_size, epsilon=1e-8):
        self.epsilon = float(epsilon)
        self.all_record = float(all_record)
        self.memory = float(all_memory - model_size)
        if self.memory <= 0:
            raise ValueError("memory is zero")

    def __call__(self, y_pred, y_true, val_fnr):
        # TODO(synk): the PyTorch module raises ValueError when intermediate
        # bf_rate / bce_loss tensors contain NaN; replicating that needs a
        # device->host sync per call, so it is left out of the hot path
        # (callers can jnp.isnan() the returned loss if desired).
        return _fpr_loss_call(y_pred, y_true, val_fnr,
                              all_record=self.all_record,
                              memory=self.memory,
                              epsilon=self.epsilon)


def _reference_loss(y_pred, y_true, val_fnr, all_record, memory, epsilon):
    """Pure-JAX port of the PyTorch forward, for verification."""
    yp = jax.nn.sigmoid(y_pred.astype(jnp.float32))
    yt = y_true.astype(jnp.float32)
    denom = jnp.maximum(yp - yp * yt + all_record * val_fnr, epsilon)
    bf = jnp.power(2.0, -(memory / denom * math.log(2.0)))
    bf = jnp.clip(bf, epsilon, 1.0 - epsilon)
    bce = -(1.0 - yt) * jnp.log(1.0 - yp)
    neg = (1.0 - yp) * jnp.log(1.0 - bf)
    bce = bce - yt * neg * 0.6
    return jnp.mean(bce)


if __name__ == "__main__":
    all_record = 1000.0
    all_memory = 600.0
    model_size = 200.0
    epsilon = 1e-8

    loss_fn = FprLossPallas(all_record, all_memory, model_size, epsilon)

    key = jax.random.PRNGKey(0)
    # Sizes chosen to exercise: 2000 -> pad + single partial tile;
    # 8192 -> aligned zero-copy path; 1_050_000 -> multiple tiles, both grid
    # chunks, a partial last tile and a clamped duplicate tile.
    for n in (2000, 8192, 1_050_000):
        key, k1, k2 = jax.random.split(key, 3)
        y_pred = jax.random.normal(k1, (n,), dtype=jnp.float32) * 2.0
        y_true = (jax.random.uniform(k2, (n,)) < 0.3).astype(jnp.float32)
        val_fnr = jnp.float32(0.05)

        loss = jax.block_until_ready(loss_fn(y_pred, y_true, val_fnr))
        ref = jax.block_until_ready(
            _reference_loss(y_pred, y_true, val_fnr,
                            all_record, all_memory - model_size, epsilon))

        if not bool(jnp.abs(loss - ref) <= 1e-3 + 1e-3 * jnp.abs(ref)):
            raise AssertionError(f"mismatch n={n}: pallas={loss} ref={ref}")

    print("KERNEL_OK")
</pallas_src>

<mosaic_0001>
module attributes {stable_mosaic.version = 11 : i64} {
  func.func @_fpr_loss_kernel(%arg0: i32, %arg1: i32, %arg2: memref<1xf32, #tpu.memory_space<smem>>, %arg3: memref<16x128xf32, #tpu.memory_space<vmem>>, %arg4: memref<16x128xf32, #tpu.memory_space<vmem>>, %arg5: memref<8x128xf32, #tpu.memory_space<vmem>>) attributes {dimension_semantics = [#tpu.dimension_semantics<parallel>, #tpu.dimension_semantics<arbitrary>], iteration_bounds = array<i64: 1, 1>, scalar_prefetch = 0 : i64, scratch_operands = 0 : i64, tpu.core_type = #tpu.core_type<tc>, window_params = [{transform_indices = @transform_0, window_bounds = array<i64: 1>}, {transform_indices = @transform_1, window_bounds = array<i64: 16, 128>}, {transform_indices = @transform_2, window_bounds = array<i64: 16, 128>}, {transform_indices = @transform_3, window_bounds = array<i64: 8, 128>}]} {
    %c1_i32 = arith.constant 1 : i32
    %0 = arith.muli %arg0, %c1_i32 : i32
    %1 = arith.addi %0, %arg1 : i32
    %c0_i32 = arith.constant 0 : i32
    %2 = arith.cmpi eq, %arg1, %c0_i32 : i32
    %3 = arith.extui %2 : i1 to i32
    %c0_i32_0 = arith.constant 0 : i32
    %4 = arith.cmpi ne, %3, %c0_i32_0 : i32
    scf.if %4 {
      %cst = arith.constant 0.000000e+00 : f32
      %12 = vector.broadcast %cst : f32 to vector<8x128xf32>
      %c0_5 = arith.constant 0 : index
      %c0_6 = arith.constant 0 : index
      %13 = vector.load %arg5[%c0_5, %c0_6] : memref<8x128xf32, #tpu.memory_space<vmem>>, vector<8x128xf32>
      tpu.vector_store %arg5[%c0_5, %c0_6], %12 {strides = array<i32>} : memref<8x128xf32, #tpu.memory_space<vmem>>, vector<8x128xf32>,
    } else {
    }
    %c0 = arith.constant 0 : index
    %5 = memref.load %arg2[%c0] : memref<1xf32, #tpu.memory_space<smem>>
    %c0_i32_1 = arith.constant 0 : i32
    %6 = arith.cmpi slt, %1, %c0_i32_1 : i32
    %7 = arith.extui %6 : i1 to i32
    %c0_i32_2 = arith.constant 0 : i32
    %8 = arith.cmpi ne, %7, %c0_i32_2 : i32
    scf.if %8 {
      %c0_5 = arith.constant 0 : index
      %c0_6 = arith.constant 0 : index
      %12 = vector.load %arg3[%c0_5, %c0_6] : memref<16x128xf32, #tpu.memory_space<vmem>>, vector<16x128xf32>
      %c0_7 = arith.constant 0 : index
      %c0_8 = arith.constant 0 : index
      %13 = vector.load %arg4[%c0_7, %c0_8] : memref<16x128xf32, #tpu.memory_space<vmem>>, vector<16x128xf32>
      %c0_9 = arith.constant 0 : index
      %c0_10 = arith.constant 0 : index
      %14 = vector.load %arg5[%c0_9, %c0_10] : memref<8x128xf32, #tpu.memory_space<vmem>>, vector<8x128xf32>
      %15 = math.absf %12 : vector<16x128xf32>
      %cst = arith.constant 0.000000e+00 : f32
      %16 = vector.broadcast %cst : f32 to vector<16x128xf32>
      %17 = arith.subf %16, %15 : vector<16x128xf32>
      %18 = math.exp %17 : vector<16x128xf32>
      %cst_11 = arith.constant 1.000000e+00 : f32
      %19 = vector.broadcast %cst_11 : f32 to vector<16x128xf32>
      %20 = arith.addf %19, %18 : vector<16x128xf32>
      %21 = tpu.reciprocal %20 {approx = true} : vector<16x128xf32> -> vector<16x128xf32>
      %cst_12 = arith.constant 0.000000e+00 : f32
      %22 = vector.broadcast %cst_12 : f32 to vector<16x128xf32>
      %23 = arith.cmpf oge, %12, %22 : vector<16x128xf32>
      %24 = arith.mulf %18, %21 : vector<16x128xf32>
      %25 = arith.select %23, %21, %24 : vector<16x128xi1>, vector<16x128xf32>
      %cst_13 = arith.constant 0.000000e+00 : f32
      %26 = vector.broadcast %cst_13 : f32 to vector<16x128xf32>
      %27 = arith.maximumf %12, %26 : vector<16x128xf32>
      %cst_14 = arith.constant 1.000000e+00 : f32
      %28 = vector.broadcast %cst_14 : f32 to vector<16x128xf32>
      %29 = arith.addf %28, %18 : vector<16x128xf32>
      %30 = math.log %29 : vector<16x128xf32>
      %31 = arith.addf %27, %30 : vector<16x128xf32>
      %cst_15 = arith.constant 0.000000e+00 : f32
      %32 = vector.broadcast %cst_15 : f32 to vector<16x128xf32>
      %33 = arith.subf %32, %31 : vector<16x128xf32>
      %34 = arith.mulf %25, %13 : vector<16x128xf32>
      %35 = arith.subf %25, %34 : vector<16x128xf32>
      %cst_16 = arith.constant 1.000000e+03 : f32
      %36 = arith.mulf %cst_16, %5 : f32
      %37 = vector.broadcast %36 : f32 to vector<16x128xf32>
      %38 = arith.addf %35, %37 : vector<16x128xf32>
      %cst_17 = arith.constant 9.99999993E-9 : f32
      %39 = vector.broadcast %cst_17 : f32 to vector<16x128xf32>
      %40 = arith.maximumf %38, %39 : vector<16x128xf32>
      %41 = tpu.reciprocal %40 {approx = true} : vector<16x128xf32> -> vector<16x128xf32>
      %cst_18 = arith.constant -192.181198 : f32
      %42 = vector.broadcast %cst_18 : f32 to vector<16x128xf32>
      %43 = arith.mulf %42, %41 : vector<16x128xf32>
      %44 = math.exp %43 : vector<16x128xf32>
      %cst_19 = arith.constant 9.99999993E-9 : f32
      %cst_20 = arith.constant 1.000000e+00 : f32
      %45 = vector.broadcast %cst_19 : f32 to vector<16x128xf32>
      %46 = arith.maximumf %45, %44 : vector<16x128xf32>
      %47 = vector.broadcast %cst_20 : f32 to vector<16x128xf32>
      %48 = arith.minimumf %47, %46 : vector<16x128xf32>
      %cst_21 = arith.constant 1.000000e+00 : f32
      %49 = vector.broadcast %cst_21 : f32 to vector<16x128xf32>
      %50 = arith.subf %49, %13 : vector<16x128xf32>
      %cst_22 = arith.constant 0.000000e+00 : f32
      %51 = vector.broadcast %cst_22 : f32 to vector<16x128xf32>
      %52 = arith.subf %51, %50 : vector<16x128xf32>
      %53 = arith.mulf %52, %33 : vector<16x128xf32>
      %cst_23 = arith.constant 6.000000e-01 : f32
      %54 = vector.broadcast %cst_23 : f32 to vector<16x128xf32>
      %55 = arith.mulf %54, %13 : vector<16x128xf32>
      %cst_24 = arith.constant 1.000000e+00 : f32
      %56 = vector.broadcast %cst_24 : f32 to vector<16x128xf32>
      %57 = arith.subf %56, %25 : vector<16x128xf32>
      %58 = arith.mulf %55, %57 : vector<16x128xf32>
      %cst_25 = arith.constant 1.000000e+00 : f32
      %59 = vector.broadcast %cst_25 : f32 to vector<16x128xf32>
      %60 = arith.subf %59, %48 : vector<16x128xf32>
      %61 = math.log %60 : vector<16x128xf32>
      %62 = arith.mulf %58, %61 : vector<16x128xf32>
      %63 = arith.subf %53, %62 : vector<16x128xf32>
      %64 = vector.shape_cast %63 : vector<16x128xf32> to vector<2x8x128xf32>
      %cst_26 = arith.constant dense<0.000000e+00> : vector<8x128xf32>
      %65 = vector.multi_reduction <add>, %64, %cst_26 [0] : vector<2x8x128xf32> to vector<8x128xf32>
      %66 = arith.addf %14, %65 : vector<8x128xf32>
      %c0_27 = arith.constant 0 : index
      %c0_28 = arith.constant 0 : index
      %67 = vector.load %arg5[%c0_27, %c0_28] : memref<8x128xf32, #tpu.memory_space<vmem>>, vector<8x128xf32>
      tpu.vector_store %arg5[%c0_27, %c0_28], %66 {strides = array<i32>} : memref<8x128xf32, #tpu.memory_space<vmem>>, vector<8x128xf32>,
    } else {
    }
    %c0_i32_3 = arith.constant 0 : i32
    %9 = arith.cmpi sge, %1, %c0_i32_3 : i32
    %10 = arith.extui %9 : i1 to i32
    %c0_i32_4 = arith.constant 0 : i32
    %11 = arith.cmpi ne, %10, %c0_i32_4 : i32
    scf.if %11 {
      %12 = tpu.iota {dimensions = array<i32: 0>} : vector<16x128xi32>
      %c16_i32 = arith.constant 16 : i32
      %13 = arith.muli %1, %c16_i32 : i32
      %14 = vector.broadcast %13 : i32 to vector<16x128xi32>
      %15 = arith.addi %12, %14 : vector<16x128xi32>
      %16 = tpu.iota {dimensions = array<i32: 1>} : vector<16x128xi32>
      %c15_i32 = arith.constant 15 : i32
      %17 = vector.broadcast %c15_i32 : i32 to vector<16x128xi32>
      %18 = arith.cmpi slt, %15, %17 : vector<16x128xi32>
      %c15_i32_5 = arith.constant 15 : i32
      %19 = vector.broadcast %c15_i32_5 : i32 to vector<16x128xi32>
      %20 = arith.cmpi eq, %15, %19 : vector<16x128xi32>
      %c80_i32 = arith.constant 80 : i32
      %21 = vector.broadcast %c80_i32 : i32 to vector<16x128xi32>
      %22 = arith.cmpi slt, %16, %21 : vector<16x128xi32>
      %23 = arith.andi %20, %22 : vector<16x128xi1>
      %24 = arith.ori %18, %23 : vector<16x128xi1>
      %c0_6 = arith.constant 0 : index
      %c0_7 = arith.constant 0 : index
      %25 = vector.load %arg3[%c0_6, %c0_7] : memref<16x128xf32, #tpu.memory_space<vmem>>, vector<16x128xf32>
      %cst = arith.constant 0.000000e+00 : f32
      %26 = vector.broadcast %cst : f32 to vector<16x128xf32>
      %27 = arith.select %24, %25, %26 : vector<16x128xi1>, vector<16x128xf32>
      %c0_8 = arith.constant 0 : index
      %c0_9 = arith.constant 0 : index
      %28 = vector.load %arg4[%c0_8, %c0_9] : memref<16x128xf32, #tpu.memory_space<vmem>>, vector<16x128xf32>
      %cst_10 = arith.constant 0.000000e+00 : f32
      %29 = vector.broadcast %cst_10 : f32 to vector<16x128xf32>
      %30 = arith.select %24, %28, %29 : vector<16x128xi1>, vector<16x128xf32>
      %31 = math.absf %27 : vector<16x128xf32>
      %cst_11 = arith.constant 0.000000e+00 : f32
      %32 = vector.broadcast %cst_11 : f32 to vector<16x128xf32>
      %33 = arith.subf %32, %31 : vector<16x128xf32>
      %34 = math.exp %33 : vector<16x128xf32>
      %cst_12 = arith.constant 1.000000e+00 : f32
      %35 = vector.broadcast %cst_12 : f32 to vector<16x128xf32>
      %36 = arith.addf %35, %34 : vector<16x128xf32>
      %37 = tpu.reciprocal %36 {approx = true} : vector<16x128xf32> -> vector<16x128xf32>
      %cst_13 = arith.constant 0.000000e+00 : f32
      %38 = vector.broadcast %cst_13 : f32 to vector<16x128xf32>
      %39 = arith.cmpf oge, %27, %38 : vector<16x128xf32>
      %40 = arith.mulf %34, %37 : vector<16x128xf32>
      %41 = arith.select %39, %37, %40 : vector<16x128xi1>, vector<16x128xf32>
      %cst_14 = arith.constant 0.000000e+00 : f32
      %42 = vector.broadcast %cst_14 : f32 to vector<16x128xf32>
      %43 = arith.maximumf %27, %42 : vector<16x128xf32>
      %cst_15 = arith.constant 1.000000e+00 : f32
      %44 = vector.broadcast %cst_15 : f32 to vector<16x128xf32>
      %45 = arith.addf %44, %34 : vector<16x128xf32>
      %46 = math.log %45 : vector<16x128xf32>
      %47 = arith.addf %43, %46 : vector<16x128xf32>
      %cst_16 = arith.constant 0.000000e+00 : f32
      %48 = vector.broadcast %cst_16 : f32 to vector<16x128xf32>
      %49 = arith.subf %48, %47 : vector<16x128xf32>
      %50 = arith.mulf %41, %30 : vector<16x128xf32>
      %51 = arith.subf %41, %50 : vector<16x128xf32>
      %cst_17 = arith.constant 1.000000e+03 : f32
      %52 = arith.mulf %cst_17, %5 : f32
      %53 = vector.broadcast %52 : f32 to vector<16x128xf32>
      %54 = arith.addf %51, %53 : vector<16x128xf32>
      %cst_18 = arith.constant 9.99999993E-9 : f32
      %55 = vector.broadcast %cst_18 : f32 to vector<16x128xf32>
      %56 = arith.maximumf %54, %55 : vector<16x128xf32>
      %57 = tpu.reciprocal %56 {approx = true} : vector<16x128xf32> -> vector<16x128xf32>
      %cst_19 = arith.constant -192.181198 : f32
      %58 = vector.broadcast %cst_19 : f32 to vector<16x128xf32>
      %59 = arith.mulf %58, %57 : vector<16x128xf32>
      %60 = math.exp %59 : vector<16x128xf32>
      %cst_20 = arith.constant 9.99999993E-9 : f32
      %cst_21 = arith.constant 1.000000e+00 : f32
      %61 = vector.broadcast %cst_20 : f32 to vector<16x128xf32>
      %62 = arith.maximumf %61, %60 : vector<16x128xf32>
      %63 = vector.broadcast %cst_21 : f32 to vector<16x128xf32>
      %64 = arith.minimumf %63, %62 : vector<16x128xf32>
      %cst_22 = arith.constant 1.000000e+00 : f32
      %65 = vector.broadcast %cst_22 : f32 to vector<16x128xf32>
      %66 = arith.subf %65, %30 : vector<16x128xf32>
      %cst_23 = arith.constant 0.000000e+00 : f32
      %67 = vector.broadcast %cst_23 : f32 to vector<16x128xf32>
      %68 = arith.subf %67, %66 : vector<16x128xf32>
      %69 = arith.mulf %68, %49 : vector<16x128xf32>
      %cst_24 = arith.constant 6.000000e-01 : f32
      %70 = vector.broadcast %cst_24 : f32 to vector<16x128xf32>
      %71 = arith.mulf %70, %30 : vector<16x128xf32>
      %cst_25 = arith.constant 1.000000e+00 : f32
      %72 = vector.broadcast %cst_25 : f32 to vector<16x128xf32>
      %73 = arith.subf %72, %41 : vector<16x128xf32>
      %74 = arith.mulf %71, %73 : vector<16x128xf32>
      %cst_26 = arith.constant 1.000000e+00 : f32
      %75 = vector.broadcast %cst_26 : f32 to vector<16x128xf32>
      %76 = arith.subf %75, %64 : vector<16x128xf32>
      %77 = math.log %76 : vector<16x128xf32>
      %78 = arith.mulf %74, %77 : vector<16x128xf32>
      %79 = arith.subf %69, %78 : vector<16x128xf32>
      %cst_27 = arith.constant 0.000000e+00 : f32
      %80 = vector.broadcast %cst_27 : f32 to vector<16x128xf32>
      %81 = arith.select %24, %79, %80 : vector<16x128xi1>, vector<16x128xf32>
      %c0_28 = arith.constant 0 : index
      %c0_29 = arith.constant 0 : index
      %82 = vector.load %arg5[%c0_28, %c0_29] : memref<8x128xf32, #tpu.memory_space<vmem>>, vector<8x128xf32>
      %83 = vector.shape_cast %81 : vector<16x128xf32> to vector<2x8x128xf32>
      %cst_30 = arith.constant dense<0.000000e+00> : vector<8x128xf32>
      %84 = vector.multi_reduction <add>, %83, %cst_30 [0] : vector<2x8x128xf32> to vector<8x128xf32>
      %85 = arith.addf %82, %84 : vector<8x128xf32>
      %c0_31 = arith.constant 0 : index
      %c0_32 = arith.constant 0 : index
      %86 = vector.load %arg5[%c0_31, %c0_32] : memref<8x128xf32, #tpu.memory_space<vmem>>, vector<8x128xf32>
      tpu.vector_store %arg5[%c0_31, %c0_32], %85 {strides = array<i32>} : memref<8x128xf32, #tpu.memory_space<vmem>>, vector<8x128xf32>,
    } else {
    }
    return
  }
  func.func @transform_0(%arg0: i32, %arg1: i32) -> i32 {
    %c0_i32 = arith.constant 0 : i32
    %c0_i32_0 = arith.constant 0 : i32
    return %c0_i32 : i32
  }
  func.func @transform_1(%arg0: i32, %arg1: i32) -> (i32, i32) {
    %c1_i32 = arith.constant 1 : i32
    %0 = arith.muli %arg0, %c1_i32 : i32
    %1 = arith.addi %0, %arg1 : i32
    %c0_i32 = arith.constant 0 : i32
    %2 = arith.minsi %1, %c0_i32 : i32
    %c0_i32_0 = arith.constant 0 : i32
    %c0_i32_1 = arith.constant 0 : i32
    return %2, %c0_i32_0 : i32, i32
  }
  func.func @transform_2(%arg0: i32, %arg1: i32) -> (i32, i32) {
    %c1_i32 = arith.constant 1 : i32
    %0 = arith.muli %arg0, %c1_i32 : i32
    %1 = arith.addi %0, %arg1 : i32
    %c0_i32 = arith.constant 0 : i32
    %2 = arith.minsi %1, %c0_i32 : i32
    %c0_i32_0 = arith.constant 0 : i32
    %c0_i32_1 = arith.constant 0 : i32
    return %2, %c0_i32_0 : i32, i32
  }
  func.func @transform_3(%arg0: i32, %arg1: i32) -> (i32, i32) {
    %c0_i32 = arith.constant 0 : i32
    %c0_i32_0 = arith.constant 0 : i32
    return %arg0, %c0_i32 : i32, i32
  }
}

</mosaic_0001>

<llo_original>
// kernel: _fpr_loss_call.1
$region0: #{_fpr_loss_call.1}
  #allocation0 [shape = 'u32[]', space=smem, size = 0x4, offset = 0x4, fixed_abs, tag = 'smem constant byte address 0x4 - core index']
  #allocation1 [shape = 'u32[144,128]{1,0:T(1,128)}', space=vmem, size = 0x12000, scoped, tag = 'internal scratch']
  #allocation2 [shape = 'f32[1]{0:T(128)S(6)}', space=smem, size = 0x200, scoped, tag = 'scoped memory for _fpr_loss_call.1']
  %s0 = inlined_call_operand.<no memory space> [shape: f32[1], index: 0, kind: input, shape index: {}]
  %s1 = inlined_call_operand.hbm [shape: f32[16,128], index: 1, kind: input, shape index: {}]
  %s2 = inlined_call_operand.hbm [shape: f32[16,128], index: 2, kind: input, shape index: {}]
  %s3 = inlined_call_operand.hbm [shape: f32[8,128], index: 3, kind: output, shape index: {}]
  %s4 = sld [smem:[#allocation0]]
  $region42: #{_fpr_loss_call.1} parent=0
    _
  %s6 = ssub.s32 1, %s4
  %s7 = scalar_select 0, %s6, %s4
  %8 = sst [smem:[#allocation2]] %s0
  $region1: #{_fpr_loss_call.1} parent=0
    #allocation3 [shape = 'u8[8192]{0}', space=vmem, size = 0x2000, scoped, tag = 'input window, operand 1, single buffered']
    #allocation4 [shape = 's32[1]{0}', space=sflag, size = 0x4, scoped, tag = 'scoped memory for _fpr_loss_call.1']
    #allocation5 [shape = 's32[1]{0}', space=sflag, size = 0x4, scoped, tag = 'scoped memory for _fpr_loss_call.1']
    #allocation6 [shape = 'u8[8192]{0}', space=vmem, size = 0x2000, scoped, tag = 'input window, operand 2, single buffered']
    #allocation7 [shape = 's32[1]{0}', space=sflag, size = 0x4, scoped, tag = 'scoped memory for _fpr_loss_call.1']
    #allocation8 [shape = 'u8[4096]{0}', space=vmem, size = 0x1000, scoped, tag = 'output window, operand 0, single buffered']
    %9 = vsyncpa [#allocation4], 0
    %10 = vsyncpa [#allocation7], 0
    %11 = vsyncpa [#allocation5], 0
    // Predicated region
    $region2: #{_fpr_loss_call.1} parent=1 // pred_check
      _
    $region3: #{_fpr_loss_call.1} parent=1 // pred_check_branch
      %13 = sbr.rel (0) target = $region5
    $region4: #{_fpr_loss_call.1} parent=1 // pred_region
      _
    $region5: #{_fpr_loss_call.1} parent=1 // pred_fallthru
      _
    // Predicated region
    $region6: #{_fpr_loss_call.1} parent=1 // pred_check
      _
    $region7: #{_fpr_loss_call.1} parent=1 // pred_check_branch
      %15 = sbr.rel (0) target = $region9
    $region8: #{_fpr_loss_call.1} parent=1 // pred_region
      %s16 = sadd.s32 0, 0
      %p17 = scmp.lt.s32.totalorder %s16, 0
      %s18 = scalar_select %p17, %s16, 0
      %s19 = smul.u32 2, %s18
      %s21 = ssub.s32 256, 256
      %22 = vsyncadd [#allocation4], %s21
      %s23 = smul.addr %s19, 128
      %s24 = scalar_lea.hbm %s1, %s23
      %s25 = sshll.u32 [#allocation3], 4
      %s26 = int_to_ptr.vmem [resolvable:$true] %s25
      %31 = dma.hbm_to_vmem [thread:$0]  %s24, 256, %s26, [#allocation4], 128, 128, 8
    $region9: #{_fpr_loss_call.1} parent=1 // pred_fallthru
      _
    // Predicated region
    $region10: #{_fpr_loss_call.1} parent=1 // pred_check
      _
    $region11: #{_fpr_loss_call.1} parent=1 // pred_check_branch
      %33 = sbr.rel (0) target = $region13
    $region12: #{_fpr_loss_call.1} parent=1 // pred_region
      %s34 = sadd.s32 0, 0
      %p35 = scmp.lt.s32.totalorder %s34, 0
      %s36 = scalar_select %p35, %s34, 0
      %s37 = smul.u32 2, %s36
      %s39 = ssub.s32 256, 256
      %40 = vsyncadd [#allocation7], %s39
      %s41 = smul.addr %s37, 128
      %s42 = scalar_lea.hbm %s2, %s41
      %s43 = sshll.u32 [#allocation6], 4
      %s44 = int_to_ptr.vmem [resolvable:$true] %s43
      %49 = dma.hbm_to_vmem [thread:$0]  %s42, 256, %s44, [#allocation7], 128, 128, 8
    $region13: #{_fpr_loss_call.1} parent=1 // pred_fallthru
      _
    // Predicated region
    $region14: #{_fpr_loss_call.1} parent=1 // pred_check
      _
    $region15: #{_fpr_loss_call.1} parent=1 // pred_check_branch
      %51 = sbr.rel (0) target = $region17
    $region16: #{_fpr_loss_call.1} parent=1 // pred_region
      %52 = dma.done [#allocation4], 256
    $region17: #{_fpr_loss_call.1} parent=1 // pred_fallthru
      _
    // Predicated region
    $region18: #{_fpr_loss_call.1} parent=1 // pred_check
      _
    $region19: #{_fpr_loss_call.1} parent=1 // pred_check_branch
      %54 = sbr.rel (0) target = $region21
    $region20: #{_fpr_loss_call.1} parent=1 // pred_region
      %55 = dma.done [#allocation7], 256
    $region21: #{_fpr_loss_call.1} parent=1 // pred_fallthru
      _
    %s56 = sadd.s32 0, 0
    %p57 = scmp.lt.s32.totalorder %s56, 0
    %s58 = scalar_select %p57, %s56, 0
    %s59 = smul.u32 2, %s58
    %s60 = sadd.s32 0, 0
    %p61 = scmp.lt.s32.totalorder %s60, 0
    %s62 = scalar_select %p61, %s60, 0
    %s63 = smul.u32 2, %s62
    %s64 = sadd.s32 0, 0
    %p65 = scmp.eq.s32.totalorder 0, 0
    // Predicated region
    $region22: #{_fpr_loss_call.1} parent=1 // pred_check
      %p66 = pneg %p65
    $region23: #{_fpr_loss_call.1} parent=1 // pred_check_branch
      %68 = sbr.rel (%p66) target = $region25
    $region24: #{_fpr_loss_call.1} parent=1 // pred_region
      %69 = vst [vmem:[#allocation8] sm:$0xff] 0.0
    $region25: #{_fpr_loss_call.1} parent=1 // pred_fallthru
      _
    %s70 = sld [smem:[#allocation2]]
    %p71 = scmp.lt.s32.totalorder %s64, 0
    // Predicated region
    $region26: #{_fpr_loss_call.1} parent=1 // pred_check
      %p72 = pneg %p71
    $region27: #{_fpr_loss_call.1} parent=1 // pred_check_branch
      %74 = sbr.rel (%p72) target = $region29
    $region28: #{_fpr_loss_call.1} parent=1 // pred_region
      %v75 = vld [vmem:[#allocation3] sm:$0xff]
      %v76 = vld [vmem:[#allocation3 + $0x8] sm:$0xff]
      %v77 = vld [vmem:[#allocation6] sm:$0xff]
      %v78 = vld [vmem:[#allocation6 + $0x8] sm:$0xff]
      %v79 = vld [vmem:[#allocation8] sm:$0xff]
      %v80 = vand.u32 2147483647, %v75
      %v81 = vand.u32 2147483647, %v76
      %v82 = vsub.f32 0.0, %v80
      %v83 = vsub.f32 0.0, %v81
      %v84 = vmul.f32 %v82, 1.442695
      %v85 = vpow.pop %v84
      %v86 = vmul.f32 %v83, 1.442695
      %v87 = vpow.pop %v86
      %v88 = vadd.f32 %v85, 1.0
      %v89 = vadd.f32 %v87, 1.0
      %v90 = vrcp.pop %v88
      %v91 = vrcp.pop %v89
      %vm92 = vcmp.ge.f32.partialorder %v75, 0.0
      %vm93 = vcmp.ge.f32.partialorder %v76, 0.0
      %v94 = vmul.f32 %v85, %v90
      %v95 = vmul.f32 %v87, %v91
      %v96 = vsel %vm92, %v90, %v94
      %v97 = vsel %vm93, %v91, %v95
      %v98 = vmax.f32 %v75, 0.0
      %v99 = vmax.f32 %v76, 0.0
      %v100 = vlog2.pop %v88
      %v101 = vmul.f32 %v100, 0.6931472
      %v102 = vlog2.pop %v89
      %v103 = vmul.f32 %v102, 0.6931472
      %v104 = vadd.f32 %v98, %v101
      %v105 = vadd.f32 %v99, %v103
      %v106 = vsub.f32 0.0, %v104
      %v107 = vsub.f32 0.0, %v105
      %v108 = vmul.f32 %v96, %v77
      %v109 = vmul.f32 %v97, %v78
      %v110 = vsub.f32 %v96, %v108
      %v111 = vsub.f32 %v97, %v109
      %s112 = smul.f32 %s70, 1000.0
      %v113 = vstv %s112
      %v114 = vadd.f32 %v110, %v113
      %v115 = vadd.f32 %v111, %v113
      %v116 = vmax.f32 %v114, 1e-08
      %v117 = vmax.f32 %v115, 1e-08
      %v118 = vrcp.pop %v116
      %v119 = vrcp.pop %v117
      %v120 = vmul.f32 %v118, -192.1812
      %v121 = vmul.f32 %v119, -192.1812
      %v122 = vmul.f32 %v120, 1.442695
      %v123 = vpow.pop %v122
      %v124 = vmul.f32 %v121, 1.442695
      %v125 = vpow.pop %v124
      %v126 = vmax.f32 %v123, 1e-08
      %v127 = vmax.f32 %v125, 1e-08
      %v128 = vmin.f32 %v126, 1.0
      %v129 = vmin.f32 %v127, 1.0
      %v130 = vsub.f32 1.0, %v77
      %v131 = vsub.f32 1.0, %v78
      %v132 = vsub.f32 0.0, %v130
      %v133 = vsub.f32 0.0, %v131
      %v134 = vmul.f32 %v132, %v106
      %v135 = vmul.f32 %v133, %v107
      %v136 = vmul.f32 %v77, 0.6
      %v137 = vmul.f32 %v78, 0.6
      %v138 = vsub.f32 1.0, %v96
      %v139 = vsub.f32 1.0, %v97
      %v140 = vmul.f32 %v136, %v138
      %v141 = vmul.f32 %v137, %v139
      %v142 = vsub.f32 1.0, %v128
      %v143 = vsub.f32 1.0, %v129
      %v144 = vlog2.pop %v142
      %v145 = vmul.f32 %v144, 0.6931472
      %v146 = vlog2.pop %v143
      %v147 = vmul.f32 %v146, 0.6931472
      %v148 = vmul.f32 %v140, %v145
      %v149 = vmul.f32 %v141, %v147
      %v150 = vsub.f32 %v134, %v148
      %v151 = vsub.f32 %v135, %v149
      %v152 = vadd.f32 %v150, %v151
      %v153 = vadd.f32 %v79, %v152
      %154 = vst [vmem:[#allocation8] sm:$0xff] %v153
    $region29: #{_fpr_loss_call.1} parent=1 // pred_fallthru
      _
    %p155 = scmp.ge.s32.totalorder %s64, 0
    // Predicated region
    $region30: #{_fpr_loss_call.1} parent=1 // pred_check
      %p156 = pneg %p155
    $region31: #{_fpr_loss_call.1} parent=1 // pred_check_branch
      %158 = sbr.rel (%p156) target = $region33
    $region32: #{_fpr_loss_call.1} parent=1 // pred_region
      %v159 = vlaneseq
      %v160 = vshrl.u32 %v159, 7
      %v161 = vadd.s32 %v160, 8
      %s162 = smul.u32 %s64, 16
      %v163 = vstv %s162
      %v164 = vadd.s32 %v160, %v163
      %v165 = vadd.s32 %v161, %v163
      %v166 = vlaneseq
      %v167 = vand.u32 %v166, 127
      %vm168 = vcmp.lt.s32.totalorder %v164, 15
      %vm169 = vcmp.lt.s32.totalorder %v165, 15
      %vm170 = vcmp.eq.s32.totalorder %v164, 15
      %vm171 = vcmp.eq.s32.totalorder %v165, 15
      %vm172 = vcmp.lt.s32.totalorder %v167, 80
      %vm173 = vmand %vm170, %vm172
      %vm174 = vmand %vm171, %vm172
      %vm175 = vmor %vm168, %vm173
      %vm176 = vmor %vm169, %vm174
      %v177 = vld [vmem:[#allocation3] sm:$0xff]
      %v178 = vld [vmem:[#allocation3 + $0x8] sm:$0xff]
      %v179 = vsel %vm175, %v177, 0.0
      %v180 = vsel %vm176, %v178, 0.0
      %v181 = vld [vmem:[#allocation6] sm:$0xff]
      %v182 = vld [vmem:[#allocation6 + $0x8] sm:$0xff]
      %v183 = vsel %vm175, %v181, 0.0
      %v184 = vsel %vm176, %v182, 0.0
      %v185 = vand.u32 2147483647, %v179
      %v186 = vand.u32 2147483647, %v180
      %v187 = vsub.f32 0.0, %v185
      %v188 = vsub.f32 0.0, %v186
      %v189 = vmul.f32 %v187, 1.442695
      %v190 = vpow.pop %v189
      %v191 = vmul.f32 %v188, 1.442695
      %v192 = vpow.pop %v191
      %v193 = vadd.f32 %v190, 1.0
      %v194 = vadd.f32 %v192, 1.0
      %v195 = vrcp.pop %v193
      %v196 = vrcp.pop %v194
      %vm197 = vcmp.ge.f32.partialorder %v179, 0.0
      %vm198 = vcmp.ge.f32.partialorder %v180, 0.0
      %v199 = vmul.f32 %v190, %v195
      %v200 = vmul.f32 %v192, %v196
      %v201 = vsel %vm197, %v195, %v199
      %v202 = vsel %vm198, %v196, %v200
      %v203 = vmax.f32 %v179, 0.0
      %v204 = vmax.f32 %v180, 0.0
      %v205 = vlog2.pop %v193
      %v206 = vmul.f32 %v205, 0.6931472
      %v207 = vlog2.pop %v194
      %v208 = vmul.f32 %v207, 0.6931472
      %v209 = vadd.f32 %v203, %v206
      %v210 = vadd.f32 %v204, %v208
      %v211 = vsub.f32 0.0, %v209
      %v212 = vsub.f32 0.0, %v210
      %v213 = vmul.f32 %v201, %v183
      %v214 = vmul.f32 %v202, %v184
      %v215 = vsub.f32 %v201, %v213
      %v216 = vsub.f32 %v202, %v214
      %s217 = smul.f32 %s70, 1000.0
      %v218 = vstv %s217
      %v219 = vadd.f32 %v215, %v218
      %v220 = vadd.f32 %v216, %v218
      %v221 = vmax.f32 %v219, 1e-08
      %v222 = vmax.f32 %v220, 1e-08
      %v223 = vrcp.pop %v221
      %v224 = vrcp.pop %v222
      %v225 = vmul.f32 %v223, -192.1812
      %v226 = vmul.f32 %v224, -192.1812
      %v227 = vmul.f32 %v225, 1.442695
      %v228 = vpow.pop %v227
      %v229 = vmul.f32 %v226, 1.442695
      %v230 = vpow.pop %v229
      %v231 = vmax.f32 %v228, 1e-08
      %v232 = vmax.f32 %v230, 1e-08
      %v233 = vmin.f32 %v231, 1.0
      %v234 = vmin.f32 %v232, 1.0
      %v235 = vsub.f32 1.0, %v183
      %v236 = vsub.f32 1.0, %v184
      %v237 = vsub.f32 0.0, %v235
      %v238 = vsub.f32 0.0, %v236
      %v239 = vmul.f32 %v237, %v211
      %v240 = vmul.f32 %v238, %v212
      %v241 = vmul.f32 %v183, 0.6
      %v242 = vmul.f32 %v184, 0.6
      %v243 = vsub.f32 1.0, %v201
      %v244 = vsub.f32 1.0, %v202
      %v245 = vmul.f32 %v241, %v243
      %v246 = vmul.f32 %v242, %v244
      %v247 = vsub.f32 1.0, %v233
      %v248 = vsub.f32 1.0, %v234
      %v249 = vlog2.pop %v247
      %v250 = vmul.f32 %v249, 0.6931472
      %v251 = vlog2.pop %v248
      %v252 = vmul.f32 %v251, 0.6931472
      %v253 = vmul.f32 %v245, %v250
      %v254 = vmul.f32 %v246, %v252
      %v255 = vsub.f32 %v239, %v253
      %v256 = vsub.f32 %v240, %v254
      %v257 = vsel %vm175, %v255, 0.0
      %v258 = vsel %vm176, %v256, 0.0
      %v259 = vld [vmem:[#allocation8] sm:$0xff]
      %v260 = vadd.f32 %v257, %v258
      %v261 = vadd.f32 %v259, %v260
      %262 = vst [vmem:[#allocation8] sm:$0xff] %v261
    $region33: #{_fpr_loss_call.1} parent=1 // pred_fallthru
      _
    // Predicated region
    $region34: #{_fpr_loss_call.1} parent=1 // pred_check
      _
    $region35: #{_fpr_loss_call.1} parent=1 // pred_check_branch
      %264 = sbr.rel (0) target = $region37
    $region36: #{_fpr_loss_call.1} parent=1 // pred_region
      %s266 = ssub.s32 128, 128
      %267 = vsyncadd [#allocation5], %s266
      %s269 = sshll.u32 [#allocation8], 4
      %s270 = int_to_ptr.vmem [resolvable:$true] %s269
      %272 = dma.vmem_to_hbm [thread:$0]  %s270, 128, %s3, [#allocation5]
    $region37: #{_fpr_loss_call.1} parent=1 // pred_fallthru
      _
    // Predicated region
    $region38: #{_fpr_loss_call.1} parent=1 // pred_check
      _
    $region39: #{_fpr_loss_call.1} parent=1 // pred_check_branch
      %274 = sbr.rel (0) target = $region41
    $region40: #{_fpr_loss_call.1} parent=1 // pred_region
      %275 = dma.done [#allocation5], 128
    $region41: #{_fpr_loss_call.1} parent=1 // pred_fallthru
      _
    %276 = vsyncpa [#allocation4], 1
    %277 = vsyncpa [#allocation7], 1
    %278 = vsyncpa [#allocation5], 1

</llo_original>
